<compile_context>
chip_gen: v6e
topology: v6e:2x2x1
jax: 0.10.0
libtpu: 0.0.40
codegen_flags: <defaults>
</compile_context>

<pallas_src>
import jax
import jax.numpy as jnp
from jax.experimental import pallas as pl
from jax.experimental.pallas import tpu as pltpu


# --------------------------------- kernel -----------------------------------

def _vaml_kernel(xt_ref, w1t_ref, b1_ref, w2t_ref, b2_ref, w3_ref, out_ref):
    """Fused PointWiseVAML for one batch tile (transposed / lane-major).

    xt_ref : [D, (E+1)*TB]  columns = [target | pred_0 | ... | pred_{E-1}]
    w1t_ref: [H, D]   w2t_ref: [H, H]     (compute dtype, e.g. bf16)
    b1_ref : [H, 1]   b2_ref : [H, 1]     (f32)
    w3_ref : [1, H]                       (f32)
    out_ref: [1, TB]                      (f32, lane-dense loss row)
    """
    tb = out_ref.shape[1]
    m = xt_ref.shape[1]
    n_ens = m // tb - 1                      # E ensemble members

    xt = xt_ref[...]

    # Hidden layers, batch on the lane axis (lane-dense), f32 accumulation.
    h1 = jnp.maximum(
        jnp.dot(w1t_ref[...], xt, preferred_element_type=jnp.float32)
        + b1_ref[...], 0.0)                                     # [H, M] f32
    h2 = jnp.maximum(
        jnp.dot(w2t_ref[...], h1.astype(w2t_ref.dtype),
                preferred_element_type=jnp.float32)
        + b2_ref[...], 0.0)                                     # [H, M] f32

    # delta = h2_target - mean_e h2_pred_e via lane-aligned static slices
    # (TB is a multiple of 128) -> E VPU adds, no reshape / VMEM copy.
    acc = h2[:, tb:2 * tb]
    for e in range(1, n_ens):
        acc = acc + h2[:, (e + 1) * tb:(e + 2) * tb]
    delta = h2[:, :tb] - acc * (1.0 / n_ens)                    # [H, TB] f32

    # Last layer is linear, so b3 cancels exactly:
    #   V(obs) - mean_e V(pred_e) = W3_row @ delta  -> lane-dense [1, TB].
    v = jnp.dot(w3_ref[...], delta, preferred_element_type=jnp.float32)
    out_ref[...] = 0.5 * v * v


# ------------------------------ tiling helpers -------------------------------

def _vmem_bytes_estimate(tile_b, E, D, H, in_bytes):
    m = (E + 1) * tile_b
    x_buf = 2 * D * m * in_bytes                  # double-buffered input tile
    h_buf = 2 * H * m * 4 + H * tile_b * 4        # h1 + h2 (f32) + delta
    w_buf = 2 * (H * D + H * H) * in_bytes + 2 * 3 * H * 4
    o_buf = 2 * tile_b * 4
    return x_buf + h_buf + w_buf + o_buf


def _vmem_capacity_bytes():
    try:
        return int(pltpu.get_tpu_info().vmem_capacity_bytes)
    except Exception:
        return 64 * 1024 * 1024                   # conservative (v7x per-core)


def _num_tensorcores():
    # v7x has 2 TensorCores/chip that a "parallel" grid axis shards across;
    # v5e/v6e have 1 (the grid is a serial loop), so don't force extra steps.
    try:
        kind = jax.devices()[0].device_kind.lower()
    except Exception:
        return 1
    return 2 if ("v7" in kind or "7x" in kind) else 1


def _pick_tile_b(B, E, D, H, in_bytes, n_cores, vmem_budget):
    cands = sorted({B} | {t for t in range(128, B, 128) if B % t == 0},
                   reverse=True)
    fits = lambda t: _vmem_bytes_estimate(t, E, D, H, in_bytes) <= vmem_budget
    # Biggest tile that fits the VMEM budget and splits evenly over the TCs.
    for t in cands:
        if fits(t) and (B // t) % n_cores == 0:
            return t
    for t in cands:
        if fits(t):
            return t
    return cands[-1]


# --------------------------------- wrapper -----------------------------------

def pointwise_vaml(obs, pred_obs, params, *, compute_dtype=jnp.bfloat16,
                   tile_b=None):
    """obs: [B, D], pred_obs: [E, B, D]  ->  loss [B, 1] f32."""
    w1, b1, w2, b2, w3, b3 = params
    del b3           # last layer is linear; b3 cancels exactly in the loss

    B, D = obs.shape
    E = pred_obs.shape[0]
    H = w1.shape[1]
    in_bytes = jnp.dtype(compute_dtype).itemsize

    n_cores = _num_tensorcores()
    vmem_cap = _vmem_capacity_bytes()
    if tile_b is None:
        tile_b = _pick_tile_b(B, E, D, H, in_bytes, n_cores,
                              vmem_budget=int(vmem_cap * 0.6))
    assert B % tile_b == 0, "batch must be divisible by tile_b"
    nt = B // tile_b

    # --- one-time layout plumbing (plain XLA): stack target + ensemble and
    # put the batch on the lane axis, grouped per batch tile:
    #   x[i, :, m*tile_b + j] = member m of batch element i*tile_b + j
    #   (member 0 = obs, members 1..E = pred_obs).
    x = jnp.concatenate([obs[None].astype(compute_dtype),
                         pred_obs.astype(compute_dtype)], axis=0)
    x = x.reshape(E + 1, nt, tile_b, D).transpose(1, 3, 0, 2)
    x = x.reshape(nt, D, (E + 1) * tile_b)

    w1t = jnp.asarray(w1).astype(compute_dtype).T                # [H, D]
    w2t = jnp.asarray(w2).astype(compute_dtype).T                # [H, H]
    b1c = jnp.asarray(b1, jnp.float32).reshape(-1, 1)            # [H, 1]
    b2c = jnp.asarray(b2, jnp.float32).reshape(-1, 1)            # [H, 1]
    w3r = jnp.asarray(w3, jnp.float32).reshape(1, -1)            # [1, H]

    vmem_need = _vmem_bytes_estimate(tile_b, E, D, H, in_bytes)
    vmem_limit = int(min(vmem_cap * 0.9,
                         max(2 * vmem_need, 32 * 1024 * 1024)))

    flops = 2 * (E + 1) * B * (D * H + H * H) + 2 * B * H + 3 * B
    bytes_accessed = (in_bytes * ((E + 1) * B * D + D * H + H * H)
                      + 4 * (3 * H + B))

    const = lambda i: (0, 0)

    def build(weight_pipeline_mode):
        wkw = ({} if weight_pipeline_mode is None
               else {"pipeline_mode": weight_pipeline_mode})
        return pl.pallas_call(
            _vaml_kernel,
            out_shape=jax.ShapeDtypeStruct((1, B), jnp.float32),
            grid_spec=pltpu.PrefetchScalarGridSpec(
                num_scalar_prefetch=0,
                grid=(nt,),
                in_specs=[
                    pl.BlockSpec((None, D, (E + 1) * tile_b),
                                 lambda i: (i, 0, 0)),            # x tile
                    pl.BlockSpec((H, D), const, **wkw),           # W1^T
                    pl.BlockSpec((H, 1), const, **wkw),           # b1
                    pl.BlockSpec((H, H), const, **wkw),           # W2^T
                    pl.BlockSpec((H, 1), const, **wkw),           # b2
                    pl.BlockSpec((1, H), const, **wkw),           # W3 row
                ],
                out_specs=pl.BlockSpec((1, tile_b), lambda i: (0, i)),
            ),
            compiler_params=pltpu.CompilerParams(
                dimension_semantics=("parallel",),
                vmem_limit_bytes=vmem_limit),
            cost_estimate=pl.CostEstimate(
                flops=flops, transcendentals=0,
                bytes_accessed=bytes_accessed),
        )

    args = (x, w1t, b1c, w2t, b2c, w3r)

    # Constant-index weight blocks don't need double buffering; only worth
    # requesting when the weights are big enough to matter for VMEM.
    weight_bytes = (H * D + H * H) * in_bytes
    if weight_bytes >= (1 << 20):
        try:
            out_row = build(pl.Buffered(1))(*args)
        except Exception:
            # TODO(synk): this jax build rejects buffer_count=1; fall back to
            # the default double-buffered weights (costs 1x extra weight VMEM).
            out_row = build(None)(*args)
    else:
        out_row = build(None)(*args)

    return out_row.reshape(B, 1)


# ----------------------------- pure-JAX reference ----------------------------

def _value_ref(x, params):
    w1, b1, w2, b2, w3, b3 = params
    h1 = jnp.maximum(x @ w1 + b1, 0.0)
    h2 = jnp.maximum(h1 @ w2 + b2, 0.0)
    return h2 @ w3 + b3


def _vaml_ref(obs, pred_obs, params):
    tgt = _value_ref(obs, params)                 # [B, 1]
    pv = _value_ref(pred_obs, params)             # [E, B, 1]
    return 0.5 * (tgt - pv.mean(axis=0)) ** 2


if __name__ == "__main__":
    # small shapes: ensemble E=4, batch B=256, obs_dim D=16, hidden H=32
    E, B, D, H = 4, 256, 16, 32

    key = jax.random.PRNGKey(0)
    k_obs, k_pred, k1, kb1, k2, kb2, k3, kb3 = jax.random.split(key, 8)

    obs = jax.random.normal(k_obs, (B, D), dtype=jnp.float32)
    pred_obs = jax.random.normal(k_pred, (E, B, D), dtype=jnp.float32)

    params = (
        jax.random.normal(k1, (D, H), dtype=jnp.float32) * 0.1,
        jax.random.normal(kb1, (1, H), dtype=jnp.float32) * 0.01,
        jax.random.normal(k2, (H, H), dtype=jnp.float32) * 0.1,
        jax.random.normal(kb2, (1, H), dtype=jnp.float32) * 0.01,
        jax.random.normal(k3, (H, 1), dtype=jnp.float32) * 0.1,
        jax.random.normal(kb3, (1, 1), dtype=jnp.float32) * 0.01,
    )

    ref = _vaml_ref(obs, pred_obs, params)

    # 1) exact-math path (f32 end-to-end) -- tight tolerance.
    out_f32 = jax.block_until_ready(
        pointwise_vaml(obs, pred_obs, params, compute_dtype=jnp.float32))
    assert out_f32.shape == (B, 1)
    assert jnp.allclose(out_f32, ref, atol=2e-5, rtol=1e-4), (
        f"f32 max abs diff {jnp.max(jnp.abs(out_f32 - ref))}")

    # 2) default bf16 inputs/weights (f32 accumulation) -- loosened tolerance.
    out_bf16 = jax.block_until_ready(pointwise_vaml(obs, pred_obs, params))
    assert out_bf16.shape == (B, 1)
    assert jnp.allclose(out_bf16, ref, atol=1e-3, rtol=5e-2), (
        f"bf16 max abs diff {jnp.max(jnp.abs(out_bf16 - ref))}")

    print("KERNEL_OK")
</pallas_src>

<mosaic_0001>
module attributes {stable_mosaic.version = 11 : i64} {
  func.func @_vaml_kernel(%arg0: i32, %arg1: memref<1x16x1280xf32, #tpu.memory_space<vmem>>, %arg2: memref<32x16xf32, #tpu.memory_space<vmem>>, %arg3: memref<32x1xf32, #tpu.memory_space<vmem>>, %arg4: memref<32x32xf32, #tpu.memory_space<vmem>>, %arg5: memref<32x1xf32, #tpu.memory_space<vmem>>, %arg6: memref<1x32xf32, #tpu.memory_space<vmem>>, %arg7: memref<1x256xf32, #tpu.memory_space<vmem>>) attributes {dimension_semantics = [#tpu.dimension_semantics<parallel>], iteration_bounds = array<i64: 1>, scalar_prefetch = 0 : i64, scratch_operands = 0 : i64, tpu.core_type = #tpu.core_type<tc>, window_params = [{transform_indices = @transform_0, window_bounds = array<i64: 1, 16, 1280>}, {pipeline_mode = #tpu.pipeline_mode<synchronous>, transform_indices = @transform_1, window_bounds = array<i64: 32, 16>}, {pipeline_mode = #tpu.pipeline_mode<synchronous>, transform_indices = @transform_2, window_bounds = array<i64: 32, 1>}, {pipeline_mode = #tpu.pipeline_mode<synchronous>, transform_indices = @transform_3, window_bounds = array<i64: 32, 32>}, {pipeline_mode = #tpu.pipeline_mode<synchronous>, transform_indices = @transform_4, window_bounds = array<i64: 32, 1>}, {pipeline_mode = #tpu.pipeline_mode<synchronous>, transform_indices = @transform_5, window_bounds = array<i64: 1, 32>}, {transform_indices = @transform_6, window_bounds = array<i64: 1, 256>}]} {
    %c0 = arith.constant 0 : index
    %c0_0 = arith.constant 0 : index
    %c0_1 = arith.constant 0 : index
    %0 = vector.load %arg1[%c0, %c0_0, %c0_1] : memref<1x16x1280xf32, #tpu.memory_space<vmem>>, vector<1x16x1280xf32>
    %1 = vector.shape_cast %0 : vector<1x16x1280xf32> to vector<16x1280xf32>
    %c0_2 = arith.constant 0 : index
    %c0_3 = arith.constant 0 : index
    %2 = vector.load %arg2[%c0_2, %c0_3] : memref<32x16xf32, #tpu.memory_space<vmem>>, vector<32x16xf32>
    %cst = arith.constant dense<0.000000e+00> : vector<32x1280xf32>
    %3 = tpu.matmul %2, %1, %cst {dimension_numbers = #tpu.dot_dimension_numbers<[1], [0], [0], [1], [0, 0, 1, 1], [], []>} : vector<32x16xf32>, vector<16x1280xf32>, vector<32x1280xf32> -> vector<32x1280xf32>
    %c0_4 = arith.constant 0 : index
    %c0_5 = arith.constant 0 : index
    %4 = vector.load %arg3[%c0_4, %c0_5] : memref<32x1xf32, #tpu.memory_space<vmem>>, vector<32x1xf32>
    %5 = vector.broadcast %4 : vector<32x1xf32> to vector<32x1280xf32>
    %6 = arith.addf %3, %5 : vector<32x1280xf32>
    %cst_6 = arith.constant 0.000000e+00 : f32
    %7 = vector.broadcast %cst_6 : f32 to vector<32x1280xf32>
    %8 = arith.maximumf %6, %7 : vector<32x1280xf32>
    %c0_7 = arith.constant 0 : index
    %c0_8 = arith.constant 0 : index
    %9 = vector.load %arg4[%c0_7, %c0_8] : memref<32x32xf32, #tpu.memory_space<vmem>>, vector<32x32xf32>
    %cst_9 = arith.constant dense<0.000000e+00> : vector<32x1280xf32>
    %10 = tpu.matmul %9, %8, %cst_9 {dimension_numbers = #tpu.dot_dimension_numbers<[1], [0], [0], [1], [0, 0, 1, 1], [], []>} : vector<32x32xf32>, vector<32x1280xf32>, vector<32x1280xf32> -> vector<32x1280xf32>
    %c0_10 = arith.constant 0 : index
    %c0_11 = arith.constant 0 : index
    %11 = vector.load %arg5[%c0_10, %c0_11] : memref<32x1xf32, #tpu.memory_space<vmem>>, vector<32x1xf32>
    %12 = vector.broadcast %11 : vector<32x1xf32> to vector<32x1280xf32>
    %13 = arith.addf %10, %12 : vector<32x1280xf32>
    %cst_12 = arith.constant 0.000000e+00 : f32
    %14 = vector.broadcast %cst_12 : f32 to vector<32x1280xf32>
    %15 = arith.maximumf %13, %14 : vector<32x1280xf32>
    %16 = vector.extract_strided_slice %15 {offsets = [0, 256], sizes = [32, 256], strides = [1, 1]} : vector<32x1280xf32> to vector<32x256xf32>
    %17 = vector.extract_strided_slice %15 {offsets = [0, 512], sizes = [32, 256], strides = [1, 1]} : vector<32x1280xf32> to vector<32x256xf32>
    %18 = arith.addf %16, %17 : vector<32x256xf32>
    %19 = vector.extract_strided_slice %15 {offsets = [0, 768], sizes = [32, 256], strides = [1, 1]} : vector<32x1280xf32> to vector<32x256xf32>
    %20 = arith.addf %18, %19 : vector<32x256xf32>
    %21 = vector.extract_strided_slice %15 {offsets = [0, 1024], sizes = [32, 256], strides = [1, 1]} : vector<32x1280xf32> to vector<32x256xf32>
    %22 = arith.addf %20, %21 : vector<32x256xf32>
    %23 = vector.extract_strided_slice %15 {offsets = [0, 0], sizes = [32, 256], strides = [1, 1]} : vector<32x1280xf32> to vector<32x256xf32>
    %cst_13 = arith.constant 2.500000e-01 : f32
    %24 = vector.broadcast %cst_13 : f32 to vector<32x256xf32>
    %25 = arith.mulf %22, %24 : vector<32x256xf32>
    %26 = arith.subf %23, %25 : vector<32x256xf32>
    %c0_14 = arith.constant 0 : index
    %c0_15 = arith.constant 0 : index
    %27 = vector.load %arg6[%c0_14, %c0_15] : memref<1x32xf32, #tpu.memory_space<vmem>>, vector<1x32xf32>
    %cst_16 = arith.constant dense<0.000000e+00> : vector<1x256xf32>
    %28 = tpu.matmul %27, %26, %cst_16 {dimension_numbers = #tpu.dot_dimension_numbers<[1], [0], [0], [1], [0, 0, 1, 1], [], []>} : vector<1x32xf32>, vector<32x256xf32>, vector<1x256xf32> -> vector<1x256xf32>
    %cst_17 = arith.constant 5.000000e-01 : f32
    %29 = vector.broadcast %cst_17 : f32 to vector<1x256xf32>
    %30 = arith.mulf %29, %28 : vector<1x256xf32>
    %31 = arith.mulf %30, %28 : vector<1x256xf32>
    %c0_18 = arith.constant 0 : index
    %c0_19 = arith.constant 0 : index
    %32 = vector.load %arg7[%c0_18, %c0_19] : memref<1x256xf32, #tpu.memory_space<vmem>>, vector<1x256xf32>
    tpu.vector_store %arg7[%c0_18, %c0_19], %31 {strides = array<i32>} : memref<1x256xf32, #tpu.memory_space<vmem>>, vector<1x256xf32>,
    return
  }
  func.func @transform_0(%arg0: i32) -> (i32, i32, i32) {
    %c0_i32 = arith.constant 0 : i32
    %c0_i32_0 = arith.constant 0 : i32
    %c0_i32_1 = arith.constant 0 : i32
    return %arg0, %c0_i32, %c0_i32_0 : i32, i32, i32
  }
  func.func @transform_1(%arg0: i32) -> (i32, i32) {
    %c0_i32 = arith.constant 0 : i32
    %c0_i32_0 = arith.constant 0 : i32
    %c0_i32_1 = arith.constant 0 : i32
    return %c0_i32, %c0_i32_0 : i32, i32
  }
  func.func @transform_2(%arg0: i32) -> (i32, i32) {
    %c0_i32 = arith.constant 0 : i32
    %c0_i32_0 = arith.constant 0 : i32
    %c0_i32_1 = arith.constant 0 : i32
    return %c0_i32, %c0_i32_0 : i32, i32
  }
  func.func @transform_3(%arg0: i32) -> (i32, i32) {
    %c0_i32 = arith.constant 0 : i32
    %c0_i32_0 = arith.constant 0 : i32
    %c0_i32_1 = arith.constant 0 : i32
    return %c0_i32, %c0_i32_0 : i32, i32
  }
  func.func @transform_4(%arg0: i32) -> (i32, i32) {
    %c0_i32 = arith.constant 0 : i32
    %c0_i32_0 = arith.constant 0 : i32
    %c0_i32_1 = arith.constant 0 : i32
    return %c0_i32, %c0_i32_0 : i32, i32
  }
  func.func @transform_5(%arg0: i32) -> (i32, i32) {
    %c0_i32 = arith.constant 0 : i32
    %c0_i32_0 = arith.constant 0 : i32
    %c0_i32_1 = arith.constant 0 : i32
    return %c0_i32, %c0_i32_0 : i32, i32
  }
  func.func @transform_6(%arg0: i32) -> (i32, i32) {
    %c0_i32 = arith.constant 0 : i32
    %c0_i32_0 = arith.constant 0 : i32
    return %c0_i32, %arg0 : i32, i32
  }
}

</mosaic_0001>

<llo_original>
// kernel: tpu_custom_call.1
$region0: #{tpu_custom_call.1}
  #allocation0 [shape = 'u32[]', space=smem, size = 0x4, offset = 0x4, fixed_abs, tag = 'smem constant byte address 0x4 - core index']
  #allocation1 [shape = 'u32[144,128]{1,0:T(1,128)}', space=vmem, size = 0x12000, scoped, tag = 'internal scratch']
  %s0 = inlined_call_operand.hbm [shape: f32[1,16,1280], index: 0, kind: input, shape index: {}]
  %s1 = inlined_call_operand.vmem [shape: f32[32,16], index: 1, kind: input, shape index: {}]
  %s2 = inlined_call_operand.vmem [shape: f32[32,1], index: 2, kind: input, shape index: {}]
  %s3 = inlined_call_operand.vmem [shape: f32[32,32], index: 3, kind: input, shape index: {}]
  %s4 = inlined_call_operand.vmem [shape: f32[32,1], index: 4, kind: input, shape index: {}]
  %s5 = inlined_call_operand.vmem [shape: f32[1,32], index: 5, kind: input, shape index: {}]
  %s6 = inlined_call_operand.hbm [shape: f32[1,256], index: 6, kind: output, shape index: {}]
  %s7 = sld [smem:[#allocation0]]
  $region38: #{tpu_custom_call.1} parent=0
    _
  %s9 = ssub.s32 1, %s7
  %s10 = scalar_select 0, %s9, %s7
  $region1: #{tpu_custom_call.1} parent=0
    #allocation2 [shape = 'u8[81920]{0}', space=vmem, size = 0x14000, scoped, tag = 'input window, operand 0, single buffered']
    #allocation3 [shape = 's32[1]{0}', space=sflag, size = 0x4, scoped, tag = 'scoped memory for tpu_custom_call.1']
    #allocation4 [shape = 's32[1]{0}', space=sflag, size = 0x4, scoped, tag = 'scoped memory for tpu_custom_call.1']
    #allocation5 [shape = 'u8[1024]{0}', space=vmem, size = 0x400, scoped, tag = 'output window, operand 0, single buffered']
    %11 = vsyncpa [#allocation3], 0
    %12 = vsyncpa [#allocation4], 0
    // Predicated region
    $region2: #{tpu_custom_call.1} parent=1 // pred_check
      _
    $region3: #{tpu_custom_call.1} parent=1 // pred_check_branch
      %14 = sbr.rel (0) target = $region5
    $region4: #{tpu_custom_call.1} parent=1 // pred_region
      %s16 = ssub.s32 2560, 2560
      %17 = vsyncadd [#allocation3], %s16
      %s18 = sshll.u32 [#allocation2], 4
      %s19 = int_to_ptr.vmem [resolvable:$true] %s18
      %24 = dma.hbm_to_vmem [thread:$0]  %s0, 2560, %s19, [#allocation3], 1280, 1280, 80
    $region5: #{tpu_custom_call.1} parent=1 // pred_fallthru
      _
    // Predicated region
    $region6: #{tpu_custom_call.1} parent=1 // pred_check
      _
    $region7: #{tpu_custom_call.1} parent=1 // pred_check_branch
      %26 = sbr.rel (0) target = $region9
    $region8: #{tpu_custom_call.1} parent=1 // pred_region
      _
    $region9: #{tpu_custom_call.1} parent=1 // pred_fallthru
      _
    // Predicated region
    $region10: #{tpu_custom_call.1} parent=1 // pred_check
      _
    $region11: #{tpu_custom_call.1} parent=1 // pred_check_branch
      %28 = sbr.rel (0) target = $region13
    $region12: #{tpu_custom_call.1} parent=1 // pred_region
      _
    $region13: #{tpu_custom_call.1} parent=1 // pred_fallthru
      _
    // Predicated region
    $region14: #{tpu_custom_call.1} parent=1 // pred_check
      _
    $region15: #{tpu_custom_call.1} parent=1 // pred_check_branch
      %30 = sbr.rel (0) target = $region17
    $region16: #{tpu_custom_call.1} parent=1 // pred_region
      _
    $region17: #{tpu_custom_call.1} parent=1 // pred_fallthru
      _
    // Predicated region
    $region18: #{tpu_custom_call.1} parent=1 // pred_check
      _
    $region19: #{tpu_custom_call.1} parent=1 // pred_check_branch
      %32 = sbr.rel (0) target = $region21
    $region20: #{tpu_custom_call.1} parent=1 // pred_region
      _
    $region21: #{tpu_custom_call.1} parent=1 // pred_fallthru
      _
    // Predicated region
    $region22: #{tpu_custom_call.1} parent=1 // pred_check
      _
    $region23: #{tpu_custom_call.1} parent=1 // pred_check_branch
      %34 = sbr.rel (0) target = $region25
    $region24: #{tpu_custom_call.1} parent=1 // pred_region
      _
    $region25: #{tpu_custom_call.1} parent=1 // pred_fallthru
      _
    // Predicated region
    $region26: #{tpu_custom_call.1} parent=1 // pred_check
      _
    $region27: #{tpu_custom_call.1} parent=1 // pred_check_branch
      %36 = sbr.rel (0) target = $region29
    $region28: #{tpu_custom_call.1} parent=1 // pred_region
      %37 = dma.done [#allocation3], 2560
    $region29: #{tpu_custom_call.1} parent=1 // pred_fallthru
      _
    %v38 = vld [vmem:[#allocation2] sm:$0xff]
    %v39 = vld [vmem:[#allocation2 + $0x8] sm:$0xff]
    %v40 = vld [vmem:[#allocation2 + $0x10] sm:$0xff]
    %v41 = vld [vmem:[#allocation2 + $0x18] sm:$0xff]
    %v42 = vld [vmem:[#allocation2 + $0x20] sm:$0xff]
    %v43 = vld [vmem:[#allocation2 + $0x28] sm:$0xff]
    %v44 = vld [vmem:[#allocation2 + $0x30] sm:$0xff]
    %v45 = vld [vmem:[#allocation2 + $0x38] sm:$0xff]
    %v46 = vld [vmem:[#allocation2 + $0x40] sm:$0xff]
    %v47 = vld [vmem:[#allocation2 + $0x48] sm:$0xff]
    %v48 = vld [vmem:[#allocation2 + $0x50] sm:$0xff]
    %v49 = vld [vmem:[#allocation2 + $0x58] sm:$0xff]
    %v50 = vld [vmem:[#allocation2 + $0x60] sm:$0xff]
    %v51 = vld [vmem:[#allocation2 + $0x68] sm:$0xff]
    %v52 = vld [vmem:[#allocation2 + $0x70] sm:$0xff]
    %v53 = vld [vmem:[#allocation2 + $0x78] sm:$0xff]
    %v54 = vld [vmem:[#allocation2 + $0x80] sm:$0xff]
    %v55 = vld [vmem:[#allocation2 + $0x88] sm:$0xff]
    %v56 = vld [vmem:[#allocation2 + $0x90] sm:$0xff]
    %v57 = vld [vmem:[#allocation2 + $0x98] sm:$0xff]
    %v58 = vld [vmem:[%s1] sm:$0xff]
    %v59 = vld [vmem:[%s1 + $0x8] sm:$0xff]
    %v60 = vld [vmem:[%s1 + $0x10] sm:$0xff]
    %v61 = vld [vmem:[%s1 + $0x18] sm:$0xff]
    %v62 = vld [vmem:[%s2] sm:$0xff]
    %v63 = vld [vmem:[%s2 + $0x8] sm:$0xff]
    %v64 = vld [vmem:[%s2 + $0x10] sm:$0xff]
    %v65 = vld [vmem:[%s2 + $0x18] sm:$0xff]
    %67 = vset.pattern.permute.xlu0 0
    %68 = vperm.xlu0 %67, %v62
    %v69 = vpop.permute.xlu0 %68
    %72 = vset.pattern.permute.xlu0 0
    %73 = vperm.xlu0 %72, %v63
    %v74 = vpop.permute.xlu0 %73
    %77 = vset.pattern.permute.xlu0 0
    %78 = vperm.xlu0 %77, %v64
    %v79 = vpop.permute.xlu0 %78
    %82 = vset.pattern.permute.xlu0 0
    %83 = vperm.xlu0 %82, %v65
    %v84 = vpop.permute.xlu0 %83
    %vm86 = vcmask 130048
    %v88 = vsel %vm86, %v58, 0
    %v91 = vsel %vm86, %v59, 0
    %v94 = vsel %vm86, %v60, 0
    %v97 = vsel %vm86, %v61, 0
    %99 = vmatprep.subr.mxu0 0.0
    %100 = vmatpush1.msra.mxu0 0.0
    %101 = vmatprep.subr.mxu0 0.0
    %102 = vmatpush1.msra.mxu0 0.0
    %103 = vmatprep.subr.mxu0 0.0
    %104 = vmatpush1.msra.mxu0 0.0
    %105 = vmatprep.subr.mxu0 0.0
    %106 = vmatpush1.msra.mxu0 0.0
    %107 = vmatprep.subr.mxu0 0.0
    %108 = vmatpush1.msra.mxu0 0.0
    %109 = vmatprep.subr.mxu0 0.0
    %110 = vmatpush1.msra.mxu0 0.0
    %111 = vmatprep.subr.mxu0 0.0
    %112 = vmatpush1.msra.mxu0 0.0
    %113 = vmatprep.subr.mxu0 0.0
    %114 = vmatpush1.msra.mxu0 0.0
    %115 = vmatprep.subr.mxu0 0.0
    %116 = vmatpush1.msra.mxu0 0.0
    %117 = vmatprep.subr.mxu0 0.0
    %118 = vmatpush1.msra.mxu0 0.0
    %119 = vmatprep.subr.mxu0 0.0
    %120 = vmatpush1.msra.mxu0 0.0
    %121 = vmatprep.subr.mxu0 0.0
    %122 = vmatpush1.msra.mxu0 0.0
    %123 = vmatprep.subr.mxu0 0.0
    %124 = vmatpush1.msra.mxu0 0.0
    %125 = vmatprep.subr.mxu0 0.0
    %126 = vmatpush1.msra.mxu0 0.0
    %127 = vmatprep.subr.mxu0 %v49
    %128 = vmatpush1.msra.mxu0 %v48
    %129 = vmatprep.subr.mxu0 %v39
    %130 = vmatpush1.msra.mxu0 %v38
    %131 = vmatprep.subr.mxu0 0.0
    %132 = vmatpush2.msra.mxu0 0.0
    %133 = vmatprep.subr.mxu0 0.0
    %134 = vmatpush2.msra.mxu0 0.0
    %135 = vmatprep.subr.mxu0 0.0
    %136 = vmatpush2.msra.mxu0 0.0
    %137 = vmatprep.subr.mxu0 0.0
    %138 = vmatpush2.msra.mxu0 0.0
    %139 = vmatprep.subr.mxu0 0.0
    %140 = vmatpush2.msra.mxu0 0.0
    %141 = vmatprep.subr.mxu0 0.0
    %142 = vmatpush2.msra.mxu0 0.0
    %143 = vmatprep.subr.mxu0 0.0
    %144 = vmatpush2.msra.mxu0 0.0
    %145 = vmatprep.subr.mxu0 0.0
    %146 = vmatpush2.msra.mxu0 0.0
    %147 = vmatprep.subr.mxu0 0.0
    %148 = vmatpush2.msra.mxu0 0.0
    %149 = vmatprep.subr.mxu0 0.0
    %150 = vmatpush2.msra.mxu0 0.0
    %151 = vmatprep.subr.mxu0 0.0
    %152 = vmatpush2.msra.mxu0 0.0
    %153 = vmatprep.subr.mxu0 0.0
    %154 = vmatpush2.msra.mxu0 0.0
    %155 = vmatprep.subr.mxu0 0.0
    %156 = vmatpush2.msra.mxu0 0.0
    %157 = vmatprep.subr.mxu0 0.0
    %158 = vmatpush2.msra.mxu0 0.0
    %159 = vmatprep.subr.mxu0 0.0
    %160 = vmatpush2.msra.mxu0 0.0
    %161 = vmatprep.subr.mxu0 0.0
    %162 = vmatpush2.msra.mxu0 0.0
    %163 = vmatprep.mubr.f32.mxu0 0.0
    %164 = vmatmul.mubr.f32.gmra.mxu0 %v88
    %v165 = vpop.f32.mrf.mxu0
    %v166 = vadd.f32 %v69, %v165
    %v167 = vpop.f32.mrf.mxu0
    %v168 = vadd.f32 %v69, %v167
    %169 = vmatprep.mubr.f32.mxu0 0.0
    %170 = vmatmul.mubr.f32.gmra.mxu0 %v91
    %v171 = vpop.f32.mrf.mxu0
    %v172 = vadd.f32 %v74, %v171
    %v173 = vpop.f32.mrf.mxu0
    %v174 = vadd.f32 %v74, %v173
    %175 = vmatprep.mubr.f32.mxu0 0.0
    %176 = vmatmul.mubr.f32.gmra.mxu0 %v94
    %v177 = vpop.f32.mrf.mxu0
    %v178 = vadd.f32 %v79, %v177
    %v179 = vpop.f32.mrf.mxu0
    %v180 = vadd.f32 %v79, %v179
    %181 = vmatprep.mubr.f32.mxu0 0.0
    %182 = vmatmul.mubr.f32.gmra.mxu0 %v97
    %v183 = vpop.f32.mrf.mxu0
    %v184 = vadd.f32 %v84, %v183
    %v185 = vpop.f32.mrf.mxu0
    %v186 = vadd.f32 %v84, %v185
    %187 = vdwg.mxu0
    %188 = vmatprep.subr.mxu0 0.0
    %189 = vmatpush1.msra.mxu0 0.0
    %190 = vmatprep.subr.mxu0 0.0
    %191 = vmatpush1.msra.mxu0 0.0
    %192 = vmatprep.subr.mxu0 0.0
    %193 = vmatpush1.msra.mxu0 0.0
    %194 = vmatprep.subr.mxu0 0.0
    %195 = vmatpush1.msra.mxu0 0.0
    %196 = vmatprep.subr.mxu0 0.0
    %197 = vmatpush1.msra.mxu0 0.0
    %198 = vmatprep.subr.mxu0 0.0
    %199 = vmatpush1.msra.mxu0 0.0
    %200 = vmatprep.subr.mxu0 0.0
    %201 = vmatpush1.msra.mxu0 0.0
    %202 = vmatprep.subr.mxu0 0.0
    %203 = vmatpush1.msra.mxu0 0.0
    %204 = vmatprep.subr.mxu0 0.0
    %205 = vmatpush1.msra.mxu0 0.0
    %206 = vmatprep.subr.mxu0 0.0
    %207 = vmatpush1.msra.mxu0 0.0
    %208 = vmatprep.subr.mxu0 0.0
    %209 = vmatpush1.msra.mxu0 0.0
    %210 = vmatprep.subr.mxu0 0.0
    %211 = vmatpush1.msra.mxu0 0.0
    %212 = vmatprep.subr.mxu0 0.0
    %213 = vmatpush1.msra.mxu0 0.0
    %214 = vmatprep.subr.mxu0 0.0
    %215 = vmatpush1.msra.mxu0 0.0
    %216 = vmatprep.subr.mxu0 %v51
    %217 = vmatpush1.msra.mxu0 %v50
    %218 = vmatprep.subr.mxu0 %v41
    %219 = vmatpush1.msra.mxu0 %v40
    %220 = vmatprep.subr.mxu0 0.0
    %221 = vmatpush2.msra.mxu0 0.0
    %222 = vmatprep.subr.mxu0 0.0
    %223 = vmatpush2.msra.mxu0 0.0
    %224 = vmatprep.subr.mxu0 0.0
    %225 = vmatpush2.msra.mxu0 0.0
    %226 = vmatprep.subr.mxu0 0.0
    %227 = vmatpush2.msra.mxu0 0.0
    %228 = vmatprep.subr.mxu0 0.0
    %229 = vmatpush2.msra.mxu0 0.0
    %230 = vmatprep.subr.mxu0 0.0
    %231 = vmatpush2.msra.mxu0 0.0
    %232 = vmatprep.subr.mxu0 0.0
    %233 = vmatpush2.msra.mxu0 0.0
    %234 = vmatprep.subr.mxu0 0.0
    %235 = vmatpush2.msra.mxu0 0.0
    %236 = vmatprep.subr.mxu0 0.0
    %237 = vmatpush2.msra.mxu0 0.0
    %238 = vmatprep.subr.mxu0 0.0
    %239 = vmatpush2.msra.mxu0 0.0
    %240 = vmatprep.subr.mxu0 0.0
    %241 = vmatpush2.msra.mxu0 0.0
    %242 = vmatprep.subr.mxu0 0.0
    %243 = vmatpush2.msra.mxu0 0.0
    %244 = vmatprep.subr.mxu0 0.0
    %245 = vmatpush2.msra.mxu0 0.0
    %246 = vmatprep.subr.mxu0 0.0
    %247 = vmatpush2.msra.mxu0 0.0
    %248 = vmatprep.subr.mxu0 0.0
    %249 = vmatpush2.msra.mxu0 0.0
    %250 = vmatprep.subr.mxu0 0.0
    %251 = vmatpush2.msra.mxu0 0.0
    %252 = vmatprep.mubr.f32.mxu0 0.0
    %253 = vmatmul.mubr.f32.gmra.mxu0 %v88
    %v254 = vpop.f32.mrf.mxu0
    %v255 = vadd.f32 %v69, %v254
    %v256 = vpop.f32.mrf.mxu0
    %v257 = vadd.f32 %v69, %v256
    %258 = vmatprep.mubr.f32.mxu0 0.0
    %259 = vmatmul.mubr.f32.gmra.mxu0 %v91
    %v260 = vpop.f32.mrf.mxu0
    %v261 = vadd.f32 %v74, %v260
    %v262 = vpop.f32.mrf.mxu0
    %v263 = vadd.f32 %v74, %v262
    %264 = vmatprep.mubr.f32.mxu0 0.0
    %265 = vmatmul.mubr.f32.gmra.mxu0 %v94
    %v266 = vpop.f32.mrf.mxu0
    %v267 = vadd.f32 %v79, %v266
    %v268 = vpop.f32.mrf.mxu0
    %v269 = vadd.f32 %v79, %v268
    %270 = vmatprep.mubr.f32.mxu0 0.0
    %271 = vmatmul.mubr.f32.gmra.mxu0 %v97
    %v272 = vpop.f32.mrf.mxu0
    %v273 = vadd.f32 %v84, %v272
    %v274 = vpop.f32.mrf.mxu0
    %v275 = vadd.f32 %v84, %v274
    %276 = vdwg.mxu0
    %277 = vmatprep.subr.mxu0 0.0
    %278 = vmatpush1.msra.mxu0 0.0
    %279 = vmatprep.subr.mxu0 0.0
    %280 = vmatpush1.msra.mxu0 0.0
    %281 = vmatprep.subr.mxu0 0.0
    %282 = vmatpush1.msra.mxu0 0.0
    %283 = vmatprep.subr.mxu0 0.0
    %284 = vmatpush1.msra.mxu0 0.0
    %285 = vmatprep.subr.mxu0 0.0
    %286 = vmatpush1.msra.mxu0 0.0
    %287 = vmatprep.subr.mxu0 0.0
    %288 = vmatpush1.msra.mxu0 0.0
    %289 = vmatprep.subr.mxu0 0.0
    %290 = vmatpush1.msra.mxu0 0.0
    %291 = vmatprep.subr.mxu0 0.0
    %292 = vmatpush1.msra.mxu0 0.0
    %293 = vmatprep.subr.mxu0 0.0
    %294 = vmatpush1.msra.mxu0 0.0
    %295 = vmatprep.subr.mxu0 0.0
    %296 = vmatpush1.msra.mxu0 0.0
    %297 = vmatprep.subr.mxu0 0.0
    %298 = vmatpush1.msra.mxu0 0.0
    %299 = vmatprep.subr.mxu0 0.0
    %300 = vmatpush1.msra.mxu0 0.0
    %301 = vmatprep.subr.mxu0 0.0
    %302 = vmatpush1.msra.mxu0 0.0
    %303 = vmatprep.subr.mxu0 0.0
    %304 = vmatpush1.msra.mxu0 0.0
    %305 = vmatprep.subr.mxu0 %v53
    %306 = vmatpush1.msra.mxu0 %v52
    %307 = vmatprep.subr.mxu0 %v43
    %308 = vmatpush1.msra.mxu0 %v42
    %309 = vmatprep.subr.mxu0 0.0
    %310 = vmatpush2.msra.mxu0 0.0
    %311 = vmatprep.subr.mxu0 0.0
    %312 = vmatpush2.msra.mxu0 0.0
    %313 = vmatprep.subr.mxu0 0.0
    %314 = vmatpush2.msra.mxu0 0.0
    %315 = vmatprep.subr.mxu0 0.0
    %316 = vmatpush2.msra.mxu0 0.0
    %317 = vmatprep.subr.mxu0 0.0
    %318 = vmatpush2.msra.mxu0 0.0
    %319 = vmatprep.subr.mxu0 0.0
    %320 = vmatpush2.msra.mxu0 0.0
    %321 = vmatprep.subr.mxu0 0.0
    %322 = vmatpush2.msra.mxu0 0.0
    %323 = vmatprep.subr.mxu0 0.0
    %324 = vmatpush2.msra.mxu0 0.0
    %325 = vmatprep.subr.mxu0 0.0
    %326 = vmatpush2.msra.mxu0 0.0
    %327 = vmatprep.subr.mxu0 0.0
    %328 = vmatpush2.msra.mxu0 0.0
    %329 = vmatprep.subr.mxu0 0.0
    %330 = vmatpush2.msra.mxu0 0.0
    %331 = vmatprep.subr.mxu0 0.0
    %332 = vmatpush2.msra.mxu0 0.0
    %333 = vmatprep.subr.mxu0 0.0
    %334 = vmatpush2.msra.mxu0 0.0
    %335 = vmatprep.subr.mxu0 0.0
    %336 = vmatpush2.msra.mxu0 0.0
    %337 = vmatprep.subr.mxu0 0.0
    %338 = vmatpush2.msra.mxu0 0.0
    %339 = vmatprep.subr.mxu0 0.0
    %340 = vmatpush2.msra.mxu0 0.0
    %341 = vmatprep.mubr.f32.mxu0 0.0
    %342 = vmatmul.mubr.f32.gmra.mxu0 %v88
    %v343 = vpop.f32.mrf.mxu0
    %v344 = vadd.f32 %v69, %v343
    %v345 = vpop.f32.mrf.mxu0
    %v346 = vadd.f32 %v69, %v345
    %347 = vmatprep.mubr.f32.mxu0 0.0
    %348 = vmatmul.mubr.f32.gmra.mxu0 %v91
    %v349 = vpop.f32.mrf.mxu0
    %v350 = vadd.f32 %v74, %v349
    %v351 = vpop.f32.mrf.mxu0
    %v352 = vadd.f32 %v74, %v351
    %353 = vmatprep.mubr.f32.mxu0 0.0
    %354 = vmatmul.mubr.f32.gmra.mxu0 %v94
    %v355 = vpop.f32.mrf.mxu0
    %v356 = vadd.f32 %v79, %v355
    %v357 = vpop.f32.mrf.mxu0
    %v358 = vadd.f32 %v79, %v357
    %359 = vmatprep.mubr.f32.mxu0 0.0
    %360 = vmatmul.mubr.f32.gmra.mxu0 %v97
    %v361 = vpop.f32.mrf.mxu0
    %v362 = vadd.f32 %v84, %v361
    %v363 = vpop.f32.mrf.mxu0
    %v364 = vadd.f32 %v84, %v363
    %365 = vdwg.mxu0
    %366 = vmatprep.subr.mxu0 0.0
    %367 = vmatpush1.msra.mxu0 0.0
    %368 = vmatprep.subr.mxu0 0.0
    %369 = vmatpush1.msra.mxu0 0.0
    %370 = vmatprep.subr.mxu0 0.0
    %371 = vmatpush1.msra.mxu0 0.0
    %372 = vmatprep.subr.mxu0 0.0
    %373 = vmatpush1.msra.mxu0 0.0
    %374 = vmatprep.subr.mxu0 0.0
    %375 = vmatpush1.msra.mxu0 0.0
    %376 = vmatprep.subr.mxu0 0.0
    %377 = vmatpush1.msra.mxu0 0.0
    %378 = vmatprep.subr.mxu0 0.0
    %379 = vmatpush1.msra.mxu0 0.0
    %380 = vmatprep.subr.mxu0 0.0
    %381 = vmatpush1.msra.mxu0 0.0
    %382 = vmatprep.subr.mxu0 0.0
    %383 = vmatpush1.msra.mxu0 0.0
    %384 = vmatprep.subr.mxu0 0.0
    %385 = vmatpush1.msra.mxu0 0.0
    %386 = vmatprep.subr.mxu0 0.0
    %387 = vmatpush1.msra.mxu0 0.0
    %388 = vmatprep.subr.mxu0 0.0
    %389 = vmatpush1.msra.mxu0 0.0
    %390 = vmatprep.subr.mxu0 0.0
    %391 = vmatpush1.msra.mxu0 0.0
    %392 = vmatprep.subr.mxu0 0.0
    %393 = vmatpush1.msra.mxu0 0.0
    %394 = vmatprep.subr.mxu0 %v55
    %395 = vmatpush1.msra.mxu0 %v54
    %396 = vmatprep.subr.mxu0 %v45
    %397 = vmatpush1.msra.mxu0 %v44
    %398 = vmatprep.subr.mxu0 0.0
    %399 = vmatpush2.msra.mxu0 0.0
    %400 = vmatprep.subr.mxu0 0.0
    %401 = vmatpush2.msra.mxu0 0.0
    %402 = vmatprep.subr.mxu0 0.0
    %403 = vmatpush2.msra.mxu0 0.0
    %404 = vmatprep.subr.mxu0 0.0
    %405 = vmatpush2.msra.mxu0 0.0
    %406 = vmatprep.subr.mxu0 0.0
    %407 = vmatpush2.msra.mxu0 0.0
    %408 = vmatprep.subr.mxu0 0.0
    %409 = vmatpush2.msra.mxu0 0.0
    %410 = vmatprep.subr.mxu0 0.0
    %411 = vmatpush2.msra.mxu0 0.0
    %412 = vmatprep.subr.mxu0 0.0
    %413 = vmatpush2.msra.mxu0 0.0
    %414 = vmatprep.subr.mxu0 0.0
    %415 = vmatpush2.msra.mxu0 0.0
    %416 = vmatprep.subr.mxu0 0.0
    %417 = vmatpush2.msra.mxu0 0.0
    %418 = vmatprep.subr.mxu0 0.0
    %419 = vmatpush2.msra.mxu0 0.0
    %420 = vmatprep.subr.mxu0 0.0
    %421 = vmatpush2.msra.mxu0 0.0
    %422 = vmatprep.subr.mxu0 0.0
    %423 = vmatpush2.msra.mxu0 0.0
    %424 = vmatprep.subr.mxu0 0.0
    %425 = vmatpush2.msra.mxu0 0.0
    %426 = vmatprep.subr.mxu0 0.0
    %427 = vmatpush2.msra.mxu0 0.0
    %428 = vmatprep.subr.mxu0 0.0
    %429 = vmatpush2.msra.mxu0 0.0
    %430 = vmatprep.mubr.f32.mxu0 0.0
    %431 = vmatmul.mubr.f32.gmra.mxu0 %v88
    %v432 = vpop.f32.mrf.mxu0
    %v433 = vadd.f32 %v69, %v432
    %v434 = vpop.f32.mrf.mxu0
    %v435 = vadd.f32 %v69, %v434
    %436 = vmatprep.mubr.f32.mxu0 0.0
    %437 = vmatmul.mubr.f32.gmra.mxu0 %v91
    %v438 = vpop.f32.mrf.mxu0
    %v439 = vadd.f32 %v74, %v438
    %v440 = vpop.f32.mrf.mxu0
    %v441 = vadd.f32 %v74, %v440
    %442 = vmatprep.mubr.f32.mxu0 0.0
    %443 = vmatmul.mubr.f32.gmra.mxu0 %v94
    %v444 = vpop.f32.mrf.mxu0
    %v445 = vadd.f32 %v79, %v444
    %v446 = vpop.f32.mrf.mxu0
    %v447 = vadd.f32 %v79, %v446
    %448 = vmatprep.mubr.f32.mxu0 0.0
    %449 = vmatmul.mubr.f32.gmra.mxu0 %v97
    %v450 = vpop.f32.mrf.mxu0
    %v451 = vadd.f32 %v84, %v450
    %v452 = vpop.f32.mrf.mxu0
    %v453 = vadd.f32 %v84, %v452
    %454 = vdwg.mxu0
    %455 = vmatprep.subr.mxu0 0.0
    %456 = vmatpush1.msra.mxu0 0.0
    %457 = vmatprep.subr.mxu0 0.0
    %458 = vmatpush1.msra.mxu0 0.0
    %459 = vmatprep.subr.mxu0 0.0
    %460 = vmatpush1.msra.mxu0 0.0
    %461 = vmatprep.subr.mxu0 0.0
    %462 = vmatpush1.msra.mxu0 0.0
    %463 = vmatprep.subr.mxu0 0.0
    %464 = vmatpush1.msra.mxu0 0.0
    %465 = vmatprep.subr.mxu0 0.0
    %466 = vmatpush1.msra.mxu0 0.0
    %467 = vmatprep.subr.mxu0 0.0
    %468 = vmatpush1.msra.mxu0 0.0
    %469 = vmatprep.subr.mxu0 0.0
    %470 = vmatpush1.msra.mxu0 0.0
    %471 = vmatprep.subr.mxu0 0.0
    %472 = vmatpush1.msra.mxu0 0.0
    %473 = vmatprep.subr.mxu0 0.0
    %474 = vmatpush1.msra.mxu0 0.0
    %475 = vmatprep.subr.mxu0 0.0
    %476 = vmatpush1.msra.mxu0 0.0
    %477 = vmatprep.subr.mxu0 0.0
    %478 = vmatpush1.msra.mxu0 0.0
    %479 = vmatprep.subr.mxu0 0.0
    %480 = vmatpush1.msra.mxu0 0.0
    %481 = vmatprep.subr.mxu0 0.0
    %482 = vmatpush1.msra.mxu0 0.0
    %483 = vmatprep.subr.mxu0 %v57
    %484 = vmatpush1.msra.mxu0 %v56
    %485 = vmatprep.subr.mxu0 %v47
    %486 = vmatpush1.msra.mxu0 %v46
    %487 = vmatprep.subr.mxu0 0.0
    %488 = vmatpush2.msra.mxu0 0.0
    %489 = vmatprep.subr.mxu0 0.0
    %490 = vmatpush2.msra.mxu0 0.0
    %491 = vmatprep.subr.mxu0 0.0
    %492 = vmatpush2.msra.mxu0 0.0
    %493 = vmatprep.subr.mxu0 0.0
    %494 = vmatpush2.msra.mxu0 0.0
    %495 = vmatprep.subr.mxu0 0.0
    %496 = vmatpush2.msra.mxu0 0.0
    %497 = vmatprep.subr.mxu0 0.0
    %498 = vmatpush2.msra.mxu0 0.0
    %499 = vmatprep.subr.mxu0 0.0
    %500 = vmatpush2.msra.mxu0 0.0
    %501 = vmatprep.subr.mxu0 0.0
    %502 = vmatpush2.msra.mxu0 0.0
    %503 = vmatprep.subr.mxu0 0.0
    %504 = vmatpush2.msra.mxu0 0.0
    %505 = vmatprep.subr.mxu0 0.0
    %506 = vmatpush2.msra.mxu0 0.0
    %507 = vmatprep.subr.mxu0 0.0
    %508 = vmatpush2.msra.mxu0 0.0
    %509 = vmatprep.subr.mxu0 0.0
    %510 = vmatpush2.msra.mxu0 0.0
    %511 = vmatprep.subr.mxu0 0.0
    %512 = vmatpush2.msra.mxu0 0.0
    %513 = vmatprep.subr.mxu0 0.0
    %514 = vmatpush2.msra.mxu0 0.0
    %515 = vmatprep.subr.mxu0 0.0
    %516 = vmatpush2.msra.mxu0 0.0
    %517 = vmatprep.subr.mxu0 0.0
    %518 = vmatpush2.msra.mxu0 0.0
    %519 = vmatprep.mubr.f32.mxu0 0.0
    %520 = vmatmul.mubr.f32.gmra.mxu0 %v88
    %v521 = vpop.f32.mrf.mxu0
    %v522 = vadd.f32 %v69, %v521
    %v523 = vpop.f32.mrf.mxu0
    %v524 = vadd.f32 %v69, %v523
    %525 = vmatprep.mubr.f32.mxu0 0.0
    %526 = vmatmul.mubr.f32.gmra.mxu0 %v91
    %v527 = vpop.f32.mrf.mxu0
    %v528 = vadd.f32 %v74, %v527
    %v529 = vpop.f32.mrf.mxu0
    %v530 = vadd.f32 %v74, %v529
    %531 = vmatprep.mubr.f32.mxu0 0.0
    %532 = vmatmul.mubr.f32.gmra.mxu0 %v94
    %v533 = vpop.f32.mrf.mxu0
    %v534 = vadd.f32 %v79, %v533
    %v535 = vpop.f32.mrf.mxu0
    %v536 = vadd.f32 %v79, %v535
    %537 = vmatprep.mubr.f32.mxu0 0.0
    %538 = vmatmul.mubr.f32.gmra.mxu0 %v97
    %v539 = vpop.f32.mrf.mxu0
    %v540 = vadd.f32 %v84, %v539
    %v541 = vpop.f32.mrf.mxu0
    %v542 = vadd.f32 %v84, %v541
    %543 = vdwg.mxu0
    %v544 = vmax.f32 %v166, 0.0
    %v545 = vmax.f32 %v168, 0.0
    %v546 = vmax.f32 %v255, 0.0
    %v547 = vmax.f32 %v257, 0.0
    %v548 = vmax.f32 %v344, 0.0
    %v549 = vmax.f32 %v346, 0.0
    %v550 = vmax.f32 %v433, 0.0
    %v551 = vmax.f32 %v435, 0.0
    %v552 = vmax.f32 %v522, 0.0
    %v553 = vmax.f32 %v524, 0.0
    %v554 = vmax.f32 %v172, 0.0
    %v555 = vmax.f32 %v174, 0.0
    %v556 = vmax.f32 %v261, 0.0
    %v557 = vmax.f32 %v263, 0.0
    %v558 = vmax.f32 %v350, 0.0
    %v559 = vmax.f32 %v352, 0.0
    %v560 = vmax.f32 %v439, 0.0
    %v561 = vmax.f32 %v441, 0.0
    %v562 = vmax.f32 %v528, 0.0
    %v563 = vmax.f32 %v530, 0.0
    %v564 = vmax.f32 %v178, 0.0
    %v565 = vmax.f32 %v180, 0.0
    %v566 = vmax.f32 %v267, 0.0
    %v567 = vmax.f32 %v269, 0.0
    %v568 = vmax.f32 %v356, 0.0
    %v569 = vmax.f32 %v358, 0.0
    %v570 = vmax.f32 %v445, 0.0
    %v571 = vmax.f32 %v447, 0.0
    %v572 = vmax.f32 %v534, 0.0
    %v573 = vmax.f32 %v536, 0.0
    %v574 = vmax.f32 %v184, 0.0
    %v575 = vmax.f32 %v186, 0.0
    %v576 = vmax.f32 %v273, 0.0
    %v577 = vmax.f32 %v275, 0.0
    %v578 = vmax.f32 %v362, 0.0
    %v579 = vmax.f32 %v364, 0.0
    %v580 = vmax.f32 %v451, 0.0
    %v581 = vmax.f32 %v453, 0.0
    %v582 = vmax.f32 %v540, 0.0
    %v583 = vmax.f32 %v542, 0.0
    %v584 = vld [vmem:[%s3] sm:$0xff]
    %v585 = vld [vmem:[%s3 + $0x8] sm:$0xff]
    %v586 = vld [vmem:[%s3 + $0x10] sm:$0xff]
    %v587 = vld [vmem:[%s3 + $0x18] sm:$0xff]
    %v588 = vld [vmem:[%s4] sm:$0xff]
    %v589 = vld [vmem:[%s4 + $0x8] sm:$0xff]
    %v590 = vld [vmem:[%s4 + $0x10] sm:$0xff]
    %v591 = vld [vmem:[%s4 + $0x18] sm:$0xff]
    %593 = vset.pattern.permute.xlu0 0
    %594 = vperm.xlu0 %593, %v588
    %v595 = vpop.permute.xlu0 %594
    %598 = vset.pattern.permute.xlu0 0
    %599 = vperm.xlu0 %598, %v589
    %v600 = vpop.permute.xlu0 %599
    %603 = vset.pattern.permute.xlu0 0
    %604 = vperm.xlu0 %603, %v590
    %v605 = vpop.permute.xlu0 %604
    %608 = vset.pattern.permute.xlu0 0
    %609 = vperm.xlu0 %608, %v591
    %v610 = vpop.permute.xlu0 %609
    %vm612 = vcmask 261120
    %v614 = vsel %vm612, %v584, 0
    %v617 = vsel %vm612, %v585, 0
    %v620 = vsel %vm612, %v586, 0
    %v623 = vsel %vm612, %v587, 0
    %625 = vmatprep.subr.mxu0 0.0
    %626 = vmatpush1.msra.mxu0 0.0
    %627 = vmatprep.subr.mxu0 0.0
    %628 = vmatpush1.msra.mxu0 0.0
    %629 = vmatprep.subr.mxu0 0.0
    %630 = vmatpush1.msra.mxu0 0.0
    %631 = vmatprep.subr.mxu0 0.0
    %632 = vmatpush1.msra.mxu0 0.0
    %633 = vmatprep.subr.mxu0 0.0
    %634 = vmatpush1.msra.mxu0 0.0
    %635 = vmatprep.subr.mxu0 0.0
    %636 = vmatpush1.msra.mxu0 0.0
    %637 = vmatprep.subr.mxu0 0.0
    %638 = vmatpush1.msra.mxu0 0.0
    %639 = vmatprep.subr.mxu0 0.0
    %640 = vmatpush1.msra.mxu0 0.0
    %641 = vmatprep.subr.mxu0 0.0
    %642 = vmatpush1.msra.mxu0 0.0
    %643 = vmatprep.subr.mxu0 0.0
    %644 = vmatpush1.msra.mxu0 0.0
    %645 = vmatprep.subr.mxu0 0.0
    %646 = vmatpush1.msra.mxu0 0.0
    %647 = vmatprep.subr.mxu0 0.0
    %648 = vmatpush1.msra.mxu0 0.0
    %649 = vmatprep.subr.mxu0 %v575
    %650 = vmatpush1.msra.mxu0 %v574
    %651 = vmatprep.subr.mxu0 %v565
    %652 = vmatpush1.msra.mxu0 %v564
    %653 = vmatprep.subr.mxu0 %v555
    %654 = vmatpush1.msra.mxu0 %v554
    %655 = vmatprep.subr.mxu0 %v545
    %656 = vmatpush1.msra.mxu0 %v544
    %657 = vmatprep.subr.mxu0 0.0
    %658 = vmatpush2.msra.mxu0 0.0
    %659 = vmatprep.subr.mxu0 0.0
    %660 = vmatpush2.msra.mxu0 0.0
    %661 = vmatprep.subr.mxu0 0.0
    %662 = vmatpush2.msra.mxu0 0.0
    %663 = vmatprep.subr.mxu0 0.0
    %664 = vmatpush2.msra.mxu0 0.0
    %665 = vmatprep.subr.mxu0 0.0
    %666 = vmatpush2.msra.mxu0 0.0
    %667 = vmatprep.subr.mxu0 0.0
    %668 = vmatpush2.msra.mxu0 0.0
    %669 = vmatprep.subr.mxu0 0.0
    %670 = vmatpush2.msra.mxu0 0.0
    %671 = vmatprep.subr.mxu0 0.0
    %672 = vmatpush2.msra.mxu0 0.0
    %673 = vmatprep.subr.mxu0 0.0
    %674 = vmatpush2.msra.mxu0 0.0
    %675 = vmatprep.subr.mxu0 0.0
    %676 = vmatpush2.msra.mxu0 0.0
    %677 = vmatprep.subr.mxu0 0.0
    %678 = vmatpush2.msra.mxu0 0.0
    %679 = vmatprep.subr.mxu0 0.0
    %680 = vmatpush2.msra.mxu0 0.0
    %681 = vmatprep.subr.mxu0 0.0
    %682 = vmatpush2.msra.mxu0 0.0
    %683 = vmatprep.subr.mxu0 0.0
    %684 = vmatpush2.msra.mxu0 0.0
    %685 = vmatprep.subr.mxu0 0.0
    %686 = vmatpush2.msra.mxu0 0.0
    %687 = vmatprep.subr.mxu0 0.0
    %688 = vmatpush2.msra.mxu0 0.0
    %689 = vmatprep.mubr.f32.mxu0 0.0
    %690 = vmatmul.mubr.f32.gmra.mxu0 %v614
    %v691 = vpop.f32.mrf.mxu0
    %v692 = vadd.f32 %v595, %v691
    %v693 = vpop.f32.mrf.mxu0
    %v694 = vadd.f32 %v595, %v693
    %695 = vmatprep.mubr.f32.mxu0 0.0
    %696 = vmatmul.mubr.f32.gmra.mxu0 %v617
    %v697 = vpop.f32.mrf.mxu0
    %v698 = vadd.f32 %v600, %v697
    %v699 = vpop.f32.mrf.mxu0
    %v700 = vadd.f32 %v600, %v699
    %701 = vmatprep.mubr.f32.mxu0 0.0
    %702 = vmatmul.mubr.f32.gmra.mxu0 %v620
    %v703 = vpop.f32.mrf.mxu0
    %v704 = vadd.f32 %v605, %v703
    %v705 = vpop.f32.mrf.mxu0
    %v706 = vadd.f32 %v605, %v705
    %707 = vmatprep.mubr.f32.mxu0 0.0
    %708 = vmatmul.mubr.f32.gmra.mxu0 %v623
    %v709 = vpop.f32.mrf.mxu0
    %v710 = vadd.f32 %v610, %v709
    %v711 = vpop.f32.mrf.mxu0
    %v712 = vadd.f32 %v610, %v711
    %713 = vdwg.mxu0
    %714 = vmatprep.subr.mxu0 0.0
    %715 = vmatpush1.msra.mxu0 0.0
    %716 = vmatprep.subr.mxu0 0.0
    %717 = vmatpush1.msra.mxu0 0.0
    %718 = vmatprep.subr.mxu0 0.0
    %719 = vmatpush1.msra.mxu0 0.0
    %720 = vmatprep.subr.mxu0 0.0
    %721 = vmatpush1.msra.mxu0 0.0
    %722 = vmatprep.subr.mxu0 0.0
    %723 = vmatpush1.msra.mxu0 0.0
    %724 = vmatprep.subr.mxu0 0.0
    %725 = vmatpush1.msra.mxu0 0.0
    %726 = vmatprep.subr.mxu0 0.0
    %727 = vmatpush1.msra.mxu0 0.0
    %728 = vmatprep.subr.mxu0 0.0
    %729 = vmatpush1.msra.mxu0 0.0
    %730 = vmatprep.subr.mxu0 0.0
    %731 = vmatpush1.msra.mxu0 0.0
    %732 = vmatprep.subr.mxu0 0.0
    %733 = vmatpush1.msra.mxu0 0.0
    %734 = vmatprep.subr.mxu0 0.0
    %735 = vmatpush1.msra.mxu0 0.0
    %736 = vmatprep.subr.mxu0 0.0
    %737 = vmatpush1.msra.mxu0 0.0
    %738 = vmatprep.subr.mxu0 %v577
    %739 = vmatpush1.msra.mxu0 %v576
    %740 = vmatprep.subr.mxu0 %v567
    %741 = vmatpush1.msra.mxu0 %v566
    %742 = vmatprep.subr.mxu0 %v557
    %743 = vmatpush1.msra.mxu0 %v556
    %744 = vmatprep.subr.mxu0 %v547
    %745 = vmatpush1.msra.mxu0 %v546
    %746 = vmatprep.subr.mxu0 0.0
    %747 = vmatpush2.msra.mxu0 0.0
    %748 = vmatprep.subr.mxu0 0.0
    %749 = vmatpush2.msra.mxu0 0.0
    %750 = vmatprep.subr.mxu0 0.0
    %751 = vmatpush2.msra.mxu0 0.0
    %752 = vmatprep.subr.mxu0 0.0
    %753 = vmatpush2.msra.mxu0 0.0
    %754 = vmatprep.subr.mxu0 0.0
    %755 = vmatpush2.msra.mxu0 0.0
    %756 = vmatprep.subr.mxu0 0.0
    %757 = vmatpush2.msra.mxu0 0.0
    %758 = vmatprep.subr.mxu0 0.0
    %759 = vmatpush2.msra.mxu0 0.0
    %760 = vmatprep.subr.mxu0 0.0
    %761 = vmatpush2.msra.mxu0 0.0
    %762 = vmatprep.subr.mxu0 0.0
    %763 = vmatpush2.msra.mxu0 0.0
    %764 = vmatprep.subr.mxu0 0.0
    %765 = vmatpush2.msra.mxu0 0.0
    %766 = vmatprep.subr.mxu0 0.0
    %767 = vmatpush2.msra.mxu0 0.0
    %768 = vmatprep.subr.mxu0 0.0
    %769 = vmatpush2.msra.mxu0 0.0
    %770 = vmatprep.subr.mxu0 0.0
    %771 = vmatpush2.msra.mxu0 0.0
    %772 = vmatprep.subr.mxu0 0.0
    %773 = vmatpush2.msra.mxu0 0.0
    %774 = vmatprep.subr.mxu0 0.0
    %775 = vmatpush2.msra.mxu0 0.0
    %776 = vmatprep.subr.mxu0 0.0
    %777 = vmatpush2.msra.mxu0 0.0
    %778 = vmatprep.mubr.f32.mxu0 0.0
    %779 = vmatmul.mubr.f32.gmra.mxu0 %v614
    %v780 = vpop.f32.mrf.mxu0
    %v781 = vadd.f32 %v595, %v780
    %v782 = vpop.f32.mrf.mxu0
    %v783 = vadd.f32 %v595, %v782
    %784 = vmatprep.mubr.f32.mxu0 0.0
    %785 = vmatmul.mubr.f32.gmra.mxu0 %v617
    %v786 = vpop.f32.mrf.mxu0
    %v787 = vadd.f32 %v600, %v786
    %v788 = vpop.f32.mrf.mxu0
    %v789 = vadd.f32 %v600, %v788
    %790 = vmatprep.mubr.f32.mxu0 0.0
    %791 = vmatmul.mubr.f32.gmra.mxu0 %v620
    %v792 = vpop.f32.mrf.mxu0
    %v793 = vadd.f32 %v605, %v792
    %v794 = vpop.f32.mrf.mxu0
    %v795 = vadd.f32 %v605, %v794
    %796 = vmatprep.mubr.f32.mxu0 0.0
    %797 = vmatmul.mubr.f32.gmra.mxu0 %v623
    %v798 = vpop.f32.mrf.mxu0
    %v799 = vadd.f32 %v610, %v798
    %v800 = vpop.f32.mrf.mxu0
    %v801 = vadd.f32 %v610, %v800
    %802 = vdwg.mxu0
    %803 = vmatprep.subr.mxu0 0.0
    %804 = vmatpush1.msra.mxu0 0.0
    %805 = vmatprep.subr.mxu0 0.0
    %806 = vmatpush1.msra.mxu0 0.0
    %807 = vmatprep.subr.mxu0 0.0
    %808 = vmatpush1.msra.mxu0 0.0
    %809 = vmatprep.subr.mxu0 0.0
    %810 = vmatpush1.msra.mxu0 0.0
    %811 = vmatprep.subr.mxu0 0.0
    %812 = vmatpush1.msra.mxu0 0.0
    %813 = vmatprep.subr.mxu0 0.0
    %814 = vmatpush1.msra.mxu0 0.0
    %815 = vmatprep.subr.mxu0 0.0
    %816 = vmatpush1.msra.mxu0 0.0
    %817 = vmatprep.subr.mxu0 0.0
    %818 = vmatpush1.msra.mxu0 0.0
    %819 = vmatprep.subr.mxu0 0.0
    %820 = vmatpush1.msra.mxu0 0.0
    %821 = vmatprep.subr.mxu0 0.0
    %822 = vmatpush1.msra.mxu0 0.0
    %823 = vmatprep.subr.mxu0 0.0
    %824 = vmatpush1.msra.mxu0 0.0
    %825 = vmatprep.subr.mxu0 0.0
    %826 = vmatpush1.msra.mxu0 0.0
    %827 = vmatprep.subr.mxu0 %v579
    %828 = vmatpush1.msra.mxu0 %v578
    %829 = vmatprep.subr.mxu0 %v569
    %830 = vmatpush1.msra.mxu0 %v568
    %831 = vmatprep.subr.mxu0 %v559
    %832 = vmatpush1.msra.mxu0 %v558
    %833 = vmatprep.subr.mxu0 %v549
    %834 = vmatpush1.msra.mxu0 %v548
    %835 = vmatprep.subr.mxu0 0.0
    %836 = vmatpush2.msra.mxu0 0.0
    %837 = vmatprep.subr.mxu0 0.0
    %838 = vmatpush2.msra.mxu0 0.0
    %839 = vmatprep.subr.mxu0 0.0
    %840 = vmatpush2.msra.mxu0 0.0
    %841 = vmatprep.subr.mxu0 0.0
    %842 = vmatpush2.msra.mxu0 0.0
    %843 = vmatprep.subr.mxu0 0.0
    %844 = vmatpush2.msra.mxu0 0.0
    %845 = vmatprep.subr.mxu0 0.0
    %846 = vmatpush2.msra.mxu0 0.0
    %847 = vmatprep.subr.mxu0 0.0
    %848 = vmatpush2.msra.mxu0 0.0
    %849 = vmatprep.subr.mxu0 0.0
    %850 = vmatpush2.msra.mxu0 0.0
    %851 = vmatprep.subr.mxu0 0.0
    %852 = vmatpush2.msra.mxu0 0.0
    %853 = vmatprep.subr.mxu0 0.0
    %854 = vmatpush2.msra.mxu0 0.0
    %855 = vmatprep.subr.mxu0 0.0
    %856 = vmatpush2.msra.mxu0 0.0
    %857 = vmatprep.subr.mxu0 0.0
    %858 = vmatpush2.msra.mxu0 0.0
    %859 = vmatprep.subr.mxu0 0.0
    %860 = vmatpush2.msra.mxu0 0.0
    %861 = vmatprep.subr.mxu0 0.0
    %862 = vmatpush2.msra.mxu0 0.0
    %863 = vmatprep.subr.mxu0 0.0
    %864 = vmatpush2.msra.mxu0 0.0
    %865 = vmatprep.subr.mxu0 0.0
    %866 = vmatpush2.msra.mxu0 0.0
    %867 = vmatprep.mubr.f32.mxu0 0.0
    %868 = vmatmul.mubr.f32.gmra.mxu0 %v614
    %v869 = vpop.f32.mrf.mxu0
    %v870 = vadd.f32 %v595, %v869
    %v871 = vpop.f32.mrf.mxu0
    %v872 = vadd.f32 %v595, %v871
    %873 = vmatprep.mubr.f32.mxu0 0.0
    %874 = vmatmul.mubr.f32.gmra.mxu0 %v617
    %v875 = vpop.f32.mrf.mxu0
    %v876 = vadd.f32 %v600, %v875
    %v877 = vpop.f32.mrf.mxu0
    %v878 = vadd.f32 %v600, %v877
    %879 = vmatprep.mubr.f32.mxu0 0.0
    %880 = vmatmul.mubr.f32.gmra.mxu0 %v620
    %v881 = vpop.f32.mrf.mxu0
    %v882 = vadd.f32 %v605, %v881
    %v883 = vpop.f32.mrf.mxu0
    %v884 = vadd.f32 %v605, %v883
    %885 = vmatprep.mubr.f32.mxu0 0.0
    %886 = vmatmul.mubr.f32.gmra.mxu0 %v623
    %v887 = vpop.f32.mrf.mxu0
    %v888 = vadd.f32 %v610, %v887
    %v889 = vpop.f32.mrf.mxu0
    %v890 = vadd.f32 %v610, %v889
    %891 = vdwg.mxu0
    %892 = vmatprep.subr.mxu0 0.0
    %893 = vmatpush1.msra.mxu0 0.0
    %894 = vmatprep.subr.mxu0 0.0
    %895 = vmatpush1.msra.mxu0 0.0
    %896 = vmatprep.subr.mxu0 0.0
    %897 = vmatpush1.msra.mxu0 0.0
    %898 = vmatprep.subr.mxu0 0.0
    %899 = vmatpush1.msra.mxu0 0.0
    %900 = vmatprep.subr.mxu0 0.0
    %901 = vmatpush1.msra.mxu0 0.0
    %902 = vmatprep.subr.mxu0 0.0
    %903 = vmatpush1.msra.mxu0 0.0
    %904 = vmatprep.subr.mxu0 0.0
    %905 = vmatpush1.msra.mxu0 0.0
    %906 = vmatprep.subr.mxu0 0.0
    %907 = vmatpush1.msra.mxu0 0.0
    %908 = vmatprep.subr.mxu0 0.0
    %909 = vmatpush1.msra.mxu0 0.0
    %910 = vmatprep.subr.mxu0 0.0
    %911 = vmatpush1.msra.mxu0 0.0
    %912 = vmatprep.subr.mxu0 0.0
    %913 = vmatpush1.msra.mxu0 0.0
    %914 = vmatprep.subr.mxu0 0.0
    %915 = vmatpush1.msra.mxu0 0.0
    %916 = vmatprep.subr.mxu0 %v581
    %917 = vmatpush1.msra.mxu0 %v580
    %918 = vmatprep.subr.mxu0 %v571
    %919 = vmatpush1.msra.mxu0 %v570
    %920 = vmatprep.subr.mxu0 %v561
    %921 = vmatpush1.msra.mxu0 %v560
    %922 = vmatprep.subr.mxu0 %v551
    %923 = vmatpush1.msra.mxu0 %v550
    %924 = vmatprep.subr.mxu0 0.0
    %925 = vmatpush2.msra.mxu0 0.0
    %926 = vmatprep.subr.mxu0 0.0
    %927 = vmatpush2.msra.mxu0 0.0
    %928 = vmatprep.subr.mxu0 0.0
    %929 = vmatpush2.msra.mxu0 0.0
    %930 = vmatprep.subr.mxu0 0.0
    %931 = vmatpush2.msra.mxu0 0.0
    %932 = vmatprep.subr.mxu0 0.0
    %933 = vmatpush2.msra.mxu0 0.0
    %934 = vmatprep.subr.mxu0 0.0
    %935 = vmatpush2.msra.mxu0 0.0
    %936 = vmatprep.subr.mxu0 0.0
    %937 = vmatpush2.msra.mxu0 0.0
    %938 = vmatprep.subr.mxu0 0.0
    %939 = vmatpush2.msra.mxu0 0.0
    %940 = vmatprep.subr.mxu0 0.0
    %941 = vmatpush2.msra.mxu0 0.0
    %942 = vmatprep.subr.mxu0 0.0
    %943 = vmatpush2.msra.mxu0 0.0
    %944 = vmatprep.subr.mxu0 0.0
    %945 = vmatpush2.msra.mxu0 0.0
    %946 = vmatprep.subr.mxu0 0.0
    %947 = vmatpush2.msra.mxu0 0.0
    %948 = vmatprep.subr.mxu0 0.0
    %949 = vmatpush2.msra.mxu0 0.0
    %950 = vmatprep.subr.mxu0 0.0
    %951 = vmatpush2.msra.mxu0 0.0
    %952 = vmatprep.subr.mxu0 0.0
    %953 = vmatpush2.msra.mxu0 0.0
    %954 = vmatprep.subr.mxu0 0.0
    %955 = vmatpush2.msra.mxu0 0.0
    %956 = vmatprep.mubr.f32.mxu0 0.0
    %957 = vmatmul.mubr.f32.gmra.mxu0 %v614
    %v958 = vpop.f32.mrf.mxu0
    %v959 = vadd.f32 %v595, %v958
    %v960 = vpop.f32.mrf.mxu0
    %v961 = vadd.f32 %v595, %v960
    %962 = vmatprep.mubr.f32.mxu0 0.0
    %963 = vmatmul.mubr.f32.gmra.mxu0 %v617
    %v964 = vpop.f32.mrf.mxu0
    %v965 = vadd.f32 %v600, %v964
    %v966 = vpop.f32.mrf.mxu0
    %v967 = vadd.f32 %v600, %v966
    %968 = vmatprep.mubr.f32.mxu0 0.0
    %969 = vmatmul.mubr.f32.gmra.mxu0 %v620
    %v970 = vpop.f32.mrf.mxu0
    %v971 = vadd.f32 %v605, %v970
    %v972 = vpop.f32.mrf.mxu0
    %v973 = vadd.f32 %v605, %v972
    %974 = vmatprep.mubr.f32.mxu0 0.0
    %975 = vmatmul.mubr.f32.gmra.mxu0 %v623
    %v976 = vpop.f32.mrf.mxu0
    %v977 = vadd.f32 %v610, %v976
    %v978 = vpop.f32.mrf.mxu0
    %v979 = vadd.f32 %v610, %v978
    %980 = vdwg.mxu0
    %981 = vmatprep.subr.mxu0 0.0
    %982 = vmatpush1.msra.mxu0 0.0
    %983 = vmatprep.subr.mxu0 0.0
    %984 = vmatpush1.msra.mxu0 0.0
    %985 = vmatprep.subr.mxu0 0.0
    %986 = vmatpush1.msra.mxu0 0.0
    %987 = vmatprep.subr.mxu0 0.0
    %988 = vmatpush1.msra.mxu0 0.0
    %989 = vmatprep.subr.mxu0 0.0
    %990 = vmatpush1.msra.mxu0 0.0
    %991 = vmatprep.subr.mxu0 0.0
    %992 = vmatpush1.msra.mxu0 0.0
    %993 = vmatprep.subr.mxu0 0.0
    %994 = vmatpush1.msra.mxu0 0.0
    %995 = vmatprep.subr.mxu0 0.0
    %996 = vmatpush1.msra.mxu0 0.0
    %997 = vmatprep.subr.mxu0 0.0
    %998 = vmatpush1.msra.mxu0 0.0
    %999 = vmatprep.subr.mxu0 0.0
    %1000 = vmatpush1.msra.mxu0 0.0
    %1001 = vmatprep.subr.mxu0 0.0
    %1002 = vmatpush1.msra.mxu0 0.0
    %1003 = vmatprep.subr.mxu0 0.0
    %1004 = vmatpush1.msra.mxu0 0.0
    %1005 = vmatprep.subr.mxu0 %v583
    %1006 = vmatpush1.msra.mxu0 %v582
    %1007 = vmatprep.subr.mxu0 %v573
    %1008 = vmatpush1.msra.mxu0 %v572
    %1009 = vmatprep.subr.mxu0 %v563
    %1010 = vmatpush1.msra.mxu0 %v562
    %1011 = vmatprep.subr.mxu0 %v553
    %1012 = vmatpush1.msra.mxu0 %v552
    %1013 = vmatprep.subr.mxu0 0.0
    %1014 = vmatpush2.msra.mxu0 0.0
    %1015 = vmatprep.subr.mxu0 0.0
    %1016 = vmatpush2.msra.mxu0 0.0
    %1017 = vmatprep.subr.mxu0 0.0
    %1018 = vmatpush2.msra.mxu0 0.0
    %1019 = vmatprep.subr.mxu0 0.0
    %1020 = vmatpush2.msra.mxu0 0.0
    %1021 = vmatprep.subr.mxu0 0.0
    %1022 = vmatpush2.msra.mxu0 0.0
    %1023 = vmatprep.subr.mxu0 0.0
    %1024 = vmatpush2.msra.mxu0 0.0
    %1025 = vmatprep.subr.mxu0 0.0
    %1026 = vmatpush2.msra.mxu0 0.0
    %1027 = vmatprep.subr.mxu0 0.0
    %1028 = vmatpush2.msra.mxu0 0.0
    %1029 = vmatprep.subr.mxu0 0.0
    %1030 = vmatpush2.msra.mxu0 0.0
    %1031 = vmatprep.subr.mxu0 0.0
    %1032 = vmatpush2.msra.mxu0 0.0
    %1033 = vmatprep.subr.mxu0 0.0
    %1034 = vmatpush2.msra.mxu0 0.0
    %1035 = vmatprep.subr.mxu0 0.0
    %1036 = vmatpush2.msra.mxu0 0.0
    %1037 = vmatprep.subr.mxu0 0.0
    %1038 = vmatpush2.msra.mxu0 0.0
    %1039 = vmatprep.subr.mxu0 0.0
    %1040 = vmatpush2.msra.mxu0 0.0
    %1041 = vmatprep.subr.mxu0 0.0
    %1042 = vmatpush2.msra.mxu0 0.0
    %1043 = vmatprep.subr.mxu0 0.0
    %1044 = vmatpush2.msra.mxu0 0.0
    %1045 = vmatprep.mubr.f32.mxu0 0.0
    %1046 = vmatmul.mubr.f32.gmra.mxu0 %v614
    %v1047 = vpop.f32.mrf.mxu0
    %v1048 = vadd.f32 %v595, %v1047
    %v1049 = vpop.f32.mrf.mxu0
    %v1050 = vadd.f32 %v595, %v1049
    %1051 = vmatprep.mubr.f32.mxu0 0.0
    %1052 = vmatmul.mubr.f32.gmra.mxu0 %v617
    %v1053 = vpop.f32.mrf.mxu0
    %v1054 = vadd.f32 %v600, %v1053
    %v1055 = vpop.f32.mrf.mxu0
    %v1056 = vadd.f32 %v600, %v1055
    %1057 = vmatprep.mubr.f32.mxu0 0.0
    %1058 = vmatmul.mubr.f32.gmra.mxu0 %v620
    %v1059 = vpop.f32.mrf.mxu0
    %v1060 = vadd.f32 %v605, %v1059
    %v1061 = vpop.f32.mrf.mxu0
    %v1062 = vadd.f32 %v605, %v1061
    %1063 = vmatprep.mubr.f32.mxu0 0.0
    %1064 = vmatmul.mubr.f32.gmra.mxu0 %v623
    %v1065 = vpop.f32.mrf.mxu0
    %v1066 = vadd.f32 %v610, %v1065
    %v1067 = vpop.f32.mrf.mxu0
    %v1068 = vadd.f32 %v610, %v1067
    %1069 = vdwg.mxu0
    %v1070 = vmax.f32 %v692, 0.0
    %v1071 = vmax.f32 %v694, 0.0
    %v1072 = vmax.f32 %v781, 0.0
    %v1073 = vmax.f32 %v783, 0.0
    %v1074 = vmax.f32 %v870, 0.0
    %v1075 = vmax.f32 %v872, 0.0
    %v1076 = vmax.f32 %v959, 0.0
    %v1077 = vmax.f32 %v961, 0.0
    %v1078 = vmax.f32 %v1048, 0.0
    %v1079 = vmax.f32 %v1050, 0.0
    %v1080 = vmax.f32 %v698, 0.0
    %v1081 = vmax.f32 %v700, 0.0
    %v1082 = vmax.f32 %v787, 0.0
    %v1083 = vmax.f32 %v789, 0.0
    %v1084 = vmax.f32 %v876, 0.0
    %v1085 = vmax.f32 %v878, 0.0
    %v1086 = vmax.f32 %v965, 0.0
    %v1087 = vmax.f32 %v967, 0.0
    %v1088 = vmax.f32 %v1054, 0.0
    %v1089 = vmax.f32 %v1056, 0.0
    %v1090 = vmax.f32 %v704, 0.0
    %v1091 = vmax.f32 %v706, 0.0
    %v1092 = vmax.f32 %v793, 0.0
    %v1093 = vmax.f32 %v795, 0.0
    %v1094 = vmax.f32 %v882, 0.0
    %v1095 = vmax.f32 %v884, 0.0
    %v1096 = vmax.f32 %v971, 0.0
    %v1097 = vmax.f32 %v973, 0.0
    %v1098 = vmax.f32 %v1060, 0.0
    %v1099 = vmax.f32 %v1062, 0.0
    %v1100 = vmax.f32 %v710, 0.0
    %v1101 = vmax.f32 %v712, 0.0
    %v1102 = vmax.f32 %v799, 0.0
    %v1103 = vmax.f32 %v801, 0.0
    %v1104 = vmax.f32 %v888, 0.0
    %v1105 = vmax.f32 %v890, 0.0
    %v1106 = vmax.f32 %v977, 0.0
    %v1107 = vmax.f32 %v979, 0.0
    %v1108 = vmax.f32 %v1066, 0.0
    %v1109 = vmax.f32 %v1068, 0.0
    %v1110 = vadd.f32 %v1072, %v1074
    %v1111 = vadd.f32 %v1073, %v1075
    %v1112 = vadd.f32 %v1082, %v1084
    %v1113 = vadd.f32 %v1083, %v1085
    %v1114 = vadd.f32 %v1092, %v1094
    %v1115 = vadd.f32 %v1093, %v1095
    %v1116 = vadd.f32 %v1102, %v1104
    %v1117 = vadd.f32 %v1103, %v1105
    %v1118 = vadd.f32 %v1110, %v1076
    %v1119 = vadd.f32 %v1111, %v1077
    %v1120 = vadd.f32 %v1112, %v1086
    %v1121 = vadd.f32 %v1113, %v1087
    %v1122 = vadd.f32 %v1114, %v1096
    %v1123 = vadd.f32 %v1115, %v1097
    %v1124 = vadd.f32 %v1116, %v1106
    %v1125 = vadd.f32 %v1117, %v1107
    %v1126 = vadd.f32 %v1118, %v1078
    %v1127 = vadd.f32 %v1119, %v1079
    %v1128 = vadd.f32 %v1120, %v1088
    %v1129 = vadd.f32 %v1121, %v1089
    %v1130 = vadd.f32 %v1122, %v1098
    %v1131 = vadd.f32 %v1123, %v1099
    %v1132 = vadd.f32 %v1124, %v1108
    %v1133 = vadd.f32 %v1125, %v1109
    %v1134 = vmul.f32 %v1126, 0.25
    %v1135 = vmul.f32 %v1127, 0.25
    %v1136 = vmul.f32 %v1128, 0.25
    %v1137 = vmul.f32 %v1129, 0.25
    %v1138 = vmul.f32 %v1130, 0.25
    %v1139 = vmul.f32 %v1131, 0.25
    %v1140 = vmul.f32 %v1132, 0.25
    %v1141 = vmul.f32 %v1133, 0.25
    %v1142 = vsub.f32 %v1070, %v1134
    %v1143 = vsub.f32 %v1071, %v1135
    %v1144 = vsub.f32 %v1080, %v1136
    %v1145 = vsub.f32 %v1081, %v1137
    %v1146 = vsub.f32 %v1090, %v1138
    %v1147 = vsub.f32 %v1091, %v1139
    %v1148 = vsub.f32 %v1100, %v1140
    %v1149 = vsub.f32 %v1101, %v1141
    %v1150 = vld [vmem:[%s5] sm:$0x1]
    %v1152 = vsel %vm612, %v1150, 0
    %1154 = vmatprep.subr.mxu0 0.0
    %1155 = vmatpush1.msra.mxu0 0.0
    %1156 = vmatprep.subr.mxu0 0.0
    %1157 = vmatpush1.msra.mxu0 0.0
    %1158 = vmatprep.subr.mxu0 0.0
    %1159 = vmatpush1.msra.mxu0 0.0
    %1160 = vmatprep.subr.mxu0 0.0
    %1161 = vmatpush1.msra.mxu0 0.0
    %1162 = vmatprep.subr.mxu0 0.0
    %1163 = vmatpush1.msra.mxu0 0.0
    %1164 = vmatprep.subr.mxu0 0.0
    %1165 = vmatpush1.msra.mxu0 0.0
    %1166 = vmatprep.subr.mxu0 0.0
    %1167 = vmatpush1.msra.mxu0 0.0
    %1168 = vmatprep.subr.mxu0 0.0
    %1169 = vmatpush1.msra.mxu0 0.0
    %1170 = vmatprep.subr.mxu0 0.0
    %1171 = vmatpush1.msra.mxu0 0.0
    %1172 = vmatprep.subr.mxu0 0.0
    %1173 = vmatpush1.msra.mxu0 0.0
    %1174 = vmatprep.subr.mxu0 0.0
    %1175 = vmatpush1.msra.mxu0 0.0
    %1176 = vmatprep.subr.mxu0 0.0
    %1177 = vmatpush1.msra.mxu0 0.0
    %1178 = vmatprep.subr.mxu0 %v1149
    %1179 = vmatpush1.msra.mxu0 %v1148
    %1180 = vmatprep.subr.mxu0 %v1147
    %1181 = vmatpush1.msra.mxu0 %v1146
    %1182 = vmatprep.subr.mxu0 %v1145
    %1183 = vmatpush1.msra.mxu0 %v1144
    %1184 = vmatprep.subr.mxu0 %v1143
    %1185 = vmatpush1.msra.mxu0 %v1142
    %1186 = vmatprep.subr.mxu0 0.0
    %1187 = vmatpush2.msra.mxu0 0.0
    %1188 = vmatprep.subr.mxu0 0.0
    %1189 = vmatpush2.msra.mxu0 0.0
    %1190 = vmatprep.subr.mxu0 0.0
    %1191 = vmatpush2.msra.mxu0 0.0
    %1192 = vmatprep.subr.mxu0 0.0
    %1193 = vmatpush2.msra.mxu0 0.0
    %1194 = vmatprep.subr.mxu0 0.0
    %1195 = vmatpush2.msra.mxu0 0.0
    %1196 = vmatprep.subr.mxu0 0.0
    %1197 = vmatpush2.msra.mxu0 0.0
    %1198 = vmatprep.subr.mxu0 0.0
    %1199 = vmatpush2.msra.mxu0 0.0
    %1200 = vmatprep.subr.mxu0 0.0
    %1201 = vmatpush2.msra.mxu0 0.0
    %1202 = vmatprep.subr.mxu0 0.0
    %1203 = vmatpush2.msra.mxu0 0.0
    %1204 = vmatprep.subr.mxu0 0.0
    %1205 = vmatpush2.msra.mxu0 0.0
    %1206 = vmatprep.subr.mxu0 0.0
    %1207 = vmatpush2.msra.mxu0 0.0
    %1208 = vmatprep.subr.mxu0 0.0
    %1209 = vmatpush2.msra.mxu0 0.0
    %1210 = vmatprep.subr.mxu0 0.0
    %1211 = vmatpush2.msra.mxu0 0.0
    %1212 = vmatprep.subr.mxu0 0.0
    %1213 = vmatpush2.msra.mxu0 0.0
    %1214 = vmatprep.subr.mxu0 0.0
    %1215 = vmatpush2.msra.mxu0 0.0
    %1216 = vmatprep.subr.mxu0 0.0
    %1217 = vmatpush2.msra.mxu0 0.0
    %1218 = vmatprep.mubr.f32.mxu0 0.0
    %1219 = vmatmul.mubr.f32.gmra.mxu0 %v1152
    %v1220 = vpop.f32.mrf.mxu0
    %v1221 = vadd.f32 0.0, %v1220
    %v1222 = vpop.f32.mrf.mxu0
    %v1223 = vadd.f32 0.0, %v1222
    %1224 = vdwg.mxu0
    %v1225 = vmul.f32 %v1221, 0.5
    %v1226 = vmul.f32 %v1223, 0.5
    %v1227 = vmul.f32 %v1225, %v1221
    %v1228 = vmul.f32 %v1226, %v1223
    %v1231 = vcombine.low %v1227, %v1228
    %v1233 = vunpack.c.l.s4 1966171168
    %v1234 = vunpack.c.0.s8 %v1233
    %v1235 = vlaneseq
    %v1236 = vshrl.u32 %v1235, 7
    %v1237 = vsub.s32 %v1234, %v1236
    %v1238 = vrot.slane %v1231, %v1237
    %v1240 = vunpack.c.l.s4 1966171168
    %v1241 = vunpack.c.0.s8 %v1240
    %v1242 = vlaneseq
    %v1243 = vshrl.u32 %v1242, 7
    %v1244 = vsub.s32 %v1241, %v1243
    %v1245 = vrot.slane %v1238, %v1244
    %v1247 = vlaneseq
    %vm1248 = vcmp.ge.s32.totalorder %v1247, 0
    %vm1249 = vcmp.lt.s32.totalorder %v1247, 256
    %vm1250 = vmand %vm1248, %vm1249
    %1251 = vst.msk [vmem:[#allocation5] sm:$0x3] %vm1250, %v1245
    // Predicated region
    $region30: #{tpu_custom_call.1} parent=1 // pred_check
      _
    $region31: #{tpu_custom_call.1} parent=1 // pred_check_branch
      %1253 = sbr.rel (0) target = $region33
    $region32: #{tpu_custom_call.1} parent=1 // pred_region
      %s1255 = ssub.s32 32, 32
      %1256 = vsyncadd [#allocation4], %s1255
      %s1258 = sshll.u32 [#allocation5], 4
      %s1259 = int_to_ptr.vmem [resolvable:$true] %s1258
      %1261 = dma.vmem_to_hbm [thread:$0]  %s1259, 32, %s6, [#allocation4]
    $region33: #{tpu_custom_call.1} parent=1 // pred_fallthru
      _
    // Predicated region
    $region34: #{tpu_custom_call.1} parent=1 // pred_check
      _
    $region35: #{tpu_custom_call.1} parent=1 // pred_check_branch
      %1263 = sbr.rel (0) target = $region37
    $region36: #{tpu_custom_call.1} parent=1 // pred_region
      %1264 = dma.done [#allocation4], 32
    $region37: #{tpu_custom_call.1} parent=1 // pred_fallthru
      _
    %1265 = vsyncpa [#allocation3], 1
    %1266 = vsyncpa [#allocation4], 1

</llo_original>
